<compile_context>
chip_gen: v6e
topology: v6e:2x2x1
jax: 0.10.0
libtpu: 0.0.40
codegen_flags: <defaults>
</compile_context>

<pallas_src>
import functools

import jax
import jax.numpy as jnp
from jax.experimental import pallas as pl
from jax.experimental.pallas import tpu as pltpu

_MIB = 1 << 20


# ----------------------------------------------------------------------------
# Kernels
# ----------------------------------------------------------------------------
def _linear_kernel_fused(x_ref, w_ref, b_ref, o_ref):
    """Single-K-block path: whole reduction in one MXU pass.

    x_ref: (tm, K_pad)    x tile (original dtype; cast in VMEM)
    w_ref: (K_pad, tn)    W^T tile (pre-cast weight dtype)
    b_ref: (1, tn)        bias tile (f32)
    o_ref: (tm, tn)       output tile
    """
    x = x_ref[...].astype(w_ref.dtype)  # in-VMEM cast; free filler when mem-bound
    acc = jnp.dot(x, w_ref[...], preferred_element_type=jnp.float32)
    o_ref[...] = (acc + b_ref[...]).astype(o_ref.dtype)


def _linear_kernel_acc(x_ref, w_ref, b_ref, o_ref, acc_ref):
    """Tiled-K path (only for very large feat_dim): f32 accumulator scratch."""
    k = pl.program_id(2)

    @pl.when(k == 0)
    def _():
        acc_ref[...] = jnp.zeros_like(acc_ref)

    x = x_ref[...].astype(w_ref.dtype)
    acc_ref[...] += jnp.dot(x, w_ref[...], preferred_element_type=jnp.float32)

    @pl.when(k == pl.num_programs(2) - 1)
    def _():
        o_ref[...] = (acc_ref[...] + b_ref[...]).astype(o_ref.dtype)


# ----------------------------------------------------------------------------
# Helpers
# ----------------------------------------------------------------------------
def _cdiv(a, b):
    return -(-a // b)


def _round_up(x, m):
    return ((x + m - 1) // m) * m


def _vmem_limit(tile_bytes):
    # Budget: double-buffer every live tile, add headroom, keep within v7x's
    # 64 MiB physical per-TC VMEM (v5e/v6e have 128 MiB physical).
    need = 2 * sum(tile_bytes)
    return int(min(max(need + 4 * _MIB, 16 * _MIB), 56 * _MIB))


# ----------------------------------------------------------------------------
# One-time parameter preparation (do NOT call per forward pass)
# ----------------------------------------------------------------------------
def prepare_classifier_params(w_t, b, *, use_bf16=True):
    """Cast + pad the constant parameters once at init.

    w_t: [feat_dim, num_classes] (i.e. torch weight transposed)
    b:   [num_classes]
    Returns (wp [K_pad, N_pad], bp [1, N_pad]) with K_pad/N_pad 128-multiples.
    use_bf16 is an explicit caller decision (bf16 weights, f32 MXU accumulation).
    """
    K, N = w_t.shape
    assert b.shape == (N,)
    K_pad = _round_up(K, 128)
    N_pad = _round_up(N, 128)
    w_dtype = jnp.bfloat16 if use_bf16 else w_t.dtype
    wp = w_t.astype(w_dtype)
    if (K_pad, N_pad) != (K, N):
        wp = jnp.pad(wp, ((0, K_pad - K), (0, N_pad - N)))
    bp = b.astype(jnp.float32)
    if N_pad != N:
        bp = jnp.pad(bp, (0, N_pad - N))
    return wp, bp.reshape(1, N_pad)


# ----------------------------------------------------------------------------
# Forward
# ----------------------------------------------------------------------------
@functools.partial(
    jax.jit, static_argnames=("num_classes", "slice_output", "w_resident_max_bytes")
)
def dot_product_classifier(
    x, wp, bp, *, num_classes, slice_output=True, w_resident_max_bytes=8 * _MIB
):
    """logits = x @ W^T + b   (equivalent to torch nn.Linear forward).

    wp/bp must come from prepare_classifier_params (padded, pre-cast).
    """
    M, K = x.shape
    K_pad, N_pad = wp.shape
    N = num_classes
    assert K <= K_pad and N <= N_pad and bp.shape == (1, N_pad)

    out_dtype = x.dtype
    x_isz = jnp.dtype(x.dtype).itemsize
    w_isz = jnp.dtype(wp.dtype).itemsize
    o_isz = jnp.dtype(out_dtype).itemsize

    # Adaptive batch tile: never pad the batch by more than one sublane group.
    sublane = 16 if x_isz == 2 else 8
    n_m = max(1, _cdiv(M, 256))
    tm = _round_up(_cdiv(M, n_m), sublane)
    M_pad = _round_up(M, tm)
    ni = M_pad // tm

    # Pad activations only (weights/bias were padded once at init).
    if (M_pad, K_pad) != (M, K):
        x = jnp.pad(x, ((0, M_pad - M), (0, K_pad - K)))

    cost = pl.CostEstimate(
        flops=2 * M_pad * K_pad * N_pad,
        transcendentals=0,
        bytes_accessed=(
            M_pad * K_pad * x_isz
            + K_pad * N_pad * w_isz
            + N_pad * 4
            + M_pad * N_pad * o_isz
        ),
    )

    w_bytes = K_pad * N_pad * w_isz
    if w_bytes <= w_resident_max_bytes:
        # ------ Path A: full W^T resident in VMEM; stream x exactly once. ------
        vmem = _vmem_limit(
            [tm * K_pad * x_isz, w_bytes, N_pad * 4, tm * N_pad * o_isz]
        )
        out = pl.pallas_call(
            _linear_kernel_fused,
            out_shape=jax.ShapeDtypeStruct((M_pad, N_pad), out_dtype),
            grid_spec=pltpu.PrefetchScalarGridSpec(
                num_scalar_prefetch=0,
                grid=(ni,),
                in_specs=[
                    pl.BlockSpec((tm, K_pad), lambda i: (i, 0)),      # x tile
                    pl.BlockSpec((K_pad, N_pad), lambda i: (0, 0)),   # full W^T (fetched once)
                    pl.BlockSpec((1, N_pad), lambda i: (0, 0)),       # bias
                ],
                out_specs=pl.BlockSpec((tm, N_pad), lambda i: (i, 0)),
            ),
            compiler_params=pltpu.CompilerParams(
                dimension_semantics=("parallel",), vmem_limit_bytes=vmem
            ),
            cost_estimate=cost,
        )(x, wp, bp)
    else:
        # ------ Path B: W too large for VMEM residency -> tile classes. ------
        # j (classes) is the leading, parallel axis so a v7x megacore split reads
        # disjoint halves of W; i (batch) is inner/arbitrary so each W tile is
        # DMA'd once and reused across all batch tiles.
        tn = min(512 if ni == 1 else 256, N_pad)
        while N_pad % tn:
            tn -= 128
        nj = N_pad // tn

        max_full_k = 4096 if w_isz == 2 else 2048  # f32 cap keeps v5e scoped VMEM safe
        if K_pad <= max_full_k:
            vmem = _vmem_limit(
                [tm * K_pad * x_isz, K_pad * tn * w_isz, tn * 4, tm * tn * o_isz]
            )
            out = pl.pallas_call(
                _linear_kernel_fused,
                out_shape=jax.ShapeDtypeStruct((M_pad, N_pad), out_dtype),
                grid_spec=pltpu.PrefetchScalarGridSpec(
                    num_scalar_prefetch=0,
                    grid=(nj, ni),
                    in_specs=[
                        pl.BlockSpec((tm, K_pad), lambda j, i: (i, 0)),
                        pl.BlockSpec((K_pad, tn), lambda j, i: (0, j)),
                        pl.BlockSpec((1, tn), lambda j, i: (0, j)),
                    ],
                    out_specs=pl.BlockSpec((tm, tn), lambda j, i: (i, j)),
                ),
                compiler_params=pltpu.CompilerParams(
                    dimension_semantics=("parallel", "arbitrary"),
                    vmem_limit_bytes=vmem,
                ),
                cost_estimate=cost,
            )(x, wp, bp)
        else:
            # Very large feat_dim: tiled reduction with an f32 accumulator.
            tk = 512
            while K_pad % tk:  # K_pad is a 128-multiple, so this terminates at <=512
                tk -= 128
            nk = K_pad // tk
            vmem = _vmem_limit(
                [tm * tk * x_isz, tk * tn * w_isz, tn * 4, tm * tn * o_isz, tm * tn * 4]
            )
            out = pl.pallas_call(
                _linear_kernel_acc,
                out_shape=jax.ShapeDtypeStruct((M_pad, N_pad), out_dtype),
                grid_spec=pltpu.PrefetchScalarGridSpec(
                    num_scalar_prefetch=0,
                    grid=(nj, ni, nk),
                    in_specs=[
                        pl.BlockSpec((tm, tk), lambda j, i, k: (i, k)),
                        pl.BlockSpec((tk, tn), lambda j, i, k: (k, j)),
                        pl.BlockSpec((1, tn), lambda j, i, k: (0, j)),
                    ],
                    out_specs=pl.BlockSpec((tm, tn), lambda j, i, k: (i, j)),
                    scratch_shapes=[pltpu.VMEM((tm, tn), jnp.float32)],
                ),
                compiler_params=pltpu.CompilerParams(
                    dimension_semantics=("parallel", "arbitrary", "arbitrary"),
                    vmem_limit_bytes=vmem,
                ),
                cost_estimate=cost,
            )(x, wp, bp)

    if slice_output and (M_pad, N_pad) != (M, N):
        # Downstream code that can mask padded classes may pass slice_output=False
        # to skip this extra HBM copy and consume the padded, lane-dense buffer.
        out = out[:M, :N]
    return out


def dot_product_classifier_forward(x, wp, bp, *, num_classes, slice_output=True):
    """Mirrors DotProduct_Classifier.forward: returns (logits, None)."""
    logits = dot_product_classifier(
        x, wp, bp, num_classes=num_classes, slice_output=slice_output
    )
    return logits, None


# ----------------------------------------------------------------------------
# Self-test
# ----------------------------------------------------------------------------
if __name__ == "__main__":
    # Deliberately non-tile-aligned to exercise the padding paths
    # (batch 20 -> 24, feat_dim 250 -> 256, num_classes 1000 -> 1024).
    batch, feat_dim, num_classes = 20, 250, 1000

    key = jax.random.PRNGKey(0)
    kx, kw, kb = jax.random.split(key, 3)
    x = jax.random.normal(kx, (batch, feat_dim), dtype=jnp.float32)
    # Stored pre-transposed: W^T has shape [feat_dim, num_classes].
    w_t = jax.random.normal(kw, (feat_dim, num_classes), dtype=jnp.float32) * 0.02
    b = jax.random.normal(kb, (num_classes,), dtype=jnp.float32) * 0.01

    # ---- Path A, bf16 weights (default deployment config) ----
    wp, bp = prepare_classifier_params(w_t, b, use_bf16=True)
    logits, aux = dot_product_classifier_forward(x, wp, bp, num_classes=num_classes)
    logits = jax.block_until_ready(logits)
    ref_bf16 = (
        jnp.dot(
            x.astype(jnp.bfloat16),
            w_t.astype(jnp.bfloat16),
            preferred_element_type=jnp.float32,
        )
        + b
    )
    assert logits.shape == (batch, num_classes)
    assert aux is None
    assert jnp.allclose(logits, ref_bf16, atol=2e-3, rtol=2e-3)

    # ---- Path A, full f32 ----
    wp32, bp32 = prepare_classifier_params(w_t, b, use_bf16=False)
    logits_f32, _ = dot_product_classifier_forward(
        x, wp32, bp32, num_classes=num_classes
    )
    logits_f32 = jax.block_until_ready(logits_f32)
    ref_f32 = x @ w_t + b
    assert jnp.allclose(logits_f32, ref_f32, atol=1e-4, rtol=1e-4)

    # ---- Path B (class-tiled fallback), forced with a tiny residency budget ----
    logits_b = dot_product_classifier(
        x, wp, bp, num_classes=num_classes, w_resident_max_bytes=0
    )
    logits_b = jax.block_until_ready(logits_b)
    assert jnp.allclose(logits_b, ref_bf16, atol=2e-3, rtol=2e-3)

    print("KERNEL_OK")
</pallas_src>

<mosaic_0001>
module attributes {stable_mosaic.version = 11 : i64} {
  func.func @_linear_kernel_fused(%arg0: i32, %arg1: memref<24x256xf32, #tpu.memory_space<vmem>>, %arg2: memref<256x1024xbf16, #tpu.memory_space<vmem>>, %arg3: memref<1x1024xf32, #tpu.memory_space<vmem>>, %arg4: memref<24x1024xf32, #tpu.memory_space<vmem>>) attributes {dimension_semantics = [#tpu.dimension_semantics<parallel>], iteration_bounds = array<i64: 1>, scalar_prefetch = 0 : i64, scratch_operands = 0 : i64, tpu.core_type = #tpu.core_type<tc>, window_params = [{transform_indices = @transform_0, window_bounds = array<i64: 24, 256>}, {pipeline_mode = #tpu.pipeline_mode<synchronous>, transform_indices = @transform_1, window_bounds = array<i64: 256, 1024>}, {pipeline_mode = #tpu.pipeline_mode<synchronous>, transform_indices = @transform_2, window_bounds = array<i64: 1, 1024>}, {transform_indices = @transform_3, window_bounds = array<i64: 24, 1024>}]} {
    %c0 = arith.constant 0 : index
    %c0_0 = arith.constant 0 : index
    %0 = vector.load %arg1[%c0, %c0_0] : memref<24x256xf32, #tpu.memory_space<vmem>>, vector<24x256xf32>
    %1 = arith.truncf %0 : vector<24x256xf32> to vector<24x256xbf16>
    %c0_1 = arith.constant 0 : index
    %c0_2 = arith.constant 0 : index
    %2 = vector.load %arg2[%c0_1, %c0_2] : memref<256x1024xbf16, #tpu.memory_space<vmem>>, vector<256x1024xbf16>
    %cst = arith.constant dense<0.000000e+00> : vector<24x1024xf32>
    %3 = tpu.matmul %1, %2, %cst {dimension_numbers = #tpu.dot_dimension_numbers<[1], [0], [0], [1], [0, 0, 1, 1], [], []>} : vector<24x256xbf16>, vector<256x1024xbf16>, vector<24x1024xf32> -> vector<24x1024xf32>
    %c0_3 = arith.constant 0 : index
    %c0_4 = arith.constant 0 : index
    %4 = vector.load %arg3[%c0_3, %c0_4] : memref<1x1024xf32, #tpu.memory_space<vmem>>, vector<1x1024xf32>
    %5 = vector.broadcast %4 : vector<1x1024xf32> to vector<24x1024xf32>
    %6 = arith.addf %3, %5 : vector<24x1024xf32>
    %c0_5 = arith.constant 0 : index
    %c0_6 = arith.constant 0 : index
    %7 = vector.load %arg4[%c0_5, %c0_6] : memref<24x1024xf32, #tpu.memory_space<vmem>>, vector<24x1024xf32>
    tpu.vector_store %arg4[%c0_5, %c0_6], %6 {strides = array<i32>} : memref<24x1024xf32, #tpu.memory_space<vmem>>, vector<24x1024xf32>,
    return
  }
  func.func @transform_0(%arg0: i32) -> (i32, i32) {
    %c0_i32 = arith.constant 0 : i32
    %c0_i32_0 = arith.constant 0 : i32
    return %arg0, %c0_i32 : i32, i32
  }
  func.func @transform_1(%arg0: i32) -> (i32, i32) {
    %c0_i32 = arith.constant 0 : i32
    %c0_i32_0 = arith.constant 0 : i32
    %c0_i32_1 = arith.constant 0 : i32
    return %c0_i32, %c0_i32_0 : i32, i32
  }
  func.func @transform_2(%arg0: i32) -> (i32, i32) {
    %c0_i32 = arith.constant 0 : i32
    %c0_i32_0 = arith.constant 0 : i32
    %c0_i32_1 = arith.constant 0 : i32
    return %c0_i32, %c0_i32_0 : i32, i32
  }
  func.func @transform_3(%arg0: i32) -> (i32, i32) {
    %c0_i32 = arith.constant 0 : i32
    %c0_i32_0 = arith.constant 0 : i32
    return %arg0, %c0_i32 : i32, i32
  }
}

</mosaic_0001>

<llo_original>
// kernel: dot_product_classifier.1
$region0: #{dot_product_classifier.1}
  #allocation0 [shape = 'u32[]', space=smem, size = 0x4, offset = 0x4, fixed_abs, tag = 'smem constant byte address 0x4 - core index']
  #allocation1 [shape = 'u32[144,128]{1,0:T(1,128)}', space=vmem, size = 0x12000, scoped, tag = 'internal scratch']
  %s0 = inlined_call_operand.vmem [shape: f32[24,256], index: 0, kind: input, shape index: {}]
  %s1 = inlined_call_operand.hbm [shape: bf16[256,1024], index: 1, kind: input, shape index: {}]
  %s2 = inlined_call_operand.vmem [shape: f32[1,1024], index: 2, kind: input, shape index: {}]
  %s3 = inlined_call_operand.hbm [shape: f32[24,1024], index: 3, kind: output, shape index: {}]
  %s4 = sld [smem:[#allocation0]]
  $region26: #{dot_product_classifier.1} parent=0
    _
  %s6 = ssub.s32 1, %s4
  %s7 = scalar_select 0, %s6, %s4
  $region1: #{dot_product_classifier.1} parent=0
    #allocation2 [shape = 'u8[524288]{0}', space=vmem, size = 0x80000, scoped, tag = 'input window, operand 1, single buffered']
    #allocation3 [shape = 's32[1]{0}', space=sflag, size = 0x4, scoped, tag = 'scoped memory for dot_product_classifier.1']
    #allocation4 [shape = 's32[1]{0}', space=sflag, size = 0x4, scoped, tag = 'scoped memory for dot_product_classifier.1']
    #allocation5 [shape = 'u8[98304]{0}', space=vmem, size = 0x18000, scoped, tag = 'output window, operand 0, single buffered']
    %8 = vsyncpa [#allocation3], 0
    %9 = vsyncpa [#allocation4], 0
    // Predicated region
    $region2: #{dot_product_classifier.1} parent=1 // pred_check
      _
    $region3: #{dot_product_classifier.1} parent=1 // pred_check_branch
      %11 = sbr.rel (0) target = $region5
    $region4: #{dot_product_classifier.1} parent=1 // pred_region
      _
    $region5: #{dot_product_classifier.1} parent=1 // pred_fallthru
      _
    // Predicated region
    $region6: #{dot_product_classifier.1} parent=1 // pred_check
      _
    $region7: #{dot_product_classifier.1} parent=1 // pred_check_branch
      %13 = sbr.rel (0) target = $region9
    $region8: #{dot_product_classifier.1} parent=1 // pred_region
      %s15 = ssub.s32 16384, 16384
      %16 = vsyncadd [#allocation3], %s15
      %s17 = sshll.u32 [#allocation2], 4
      %s18 = int_to_ptr.vmem [resolvable:$true] %s17
      %23 = dma.hbm_to_vmem [thread:$0]  %s1, 16384, %s18, [#allocation3], 512, 512, 32
    $region9: #{dot_product_classifier.1} parent=1 // pred_fallthru
      _
    // Predicated region
    $region10: #{dot_product_classifier.1} parent=1 // pred_check
      _
    $region11: #{dot_product_classifier.1} parent=1 // pred_check_branch
      %25 = sbr.rel (0) target = $region13
    $region12: #{dot_product_classifier.1} parent=1 // pred_region
      _
    $region13: #{dot_product_classifier.1} parent=1 // pred_fallthru
      _
    // Predicated region
    $region14: #{dot_product_classifier.1} parent=1 // pred_check
      _
    $region15: #{dot_product_classifier.1} parent=1 // pred_check_branch
      %27 = sbr.rel (0) target = $region17
    $region16: #{dot_product_classifier.1} parent=1 // pred_region
      %28 = dma.done [#allocation3], 16384
    $region17: #{dot_product_classifier.1} parent=1 // pred_fallthru
      _
    %v29 = vld [vmem:[%s0] sm:$0xff]
    %v30 = vld [vmem:[%s0 + $0x8] sm:$0xff]
    %v31 = vld [vmem:[%s0 + $0x10] sm:$0xff]
    %v32 = vld [vmem:[%s0 + $0x18] sm:$0xff]
    %v33 = vld [vmem:[%s0 + $0x20] sm:$0xff]
    %v34 = vld [vmem:[%s0 + $0x28] sm:$0xff]
    %v35 = vpack.c.bf16 %v31, %v29
    %v36 = vpack.c.bf16 %v32, %v30
    %v37 = vpack.c.bf16 %v33, %v33
    %v38 = vpack.c.bf16 %v34, %v34
    %v39 = vld [vmem:[#allocation2] sm:$0xff]
    %v40 = vld [vmem:[#allocation2 + $0x8] sm:$0xff]
    %v41 = vld [vmem:[#allocation2 + $0x10] sm:$0xff]
    %v42 = vld [vmem:[#allocation2 + $0x18] sm:$0xff]
    %v43 = vld [vmem:[#allocation2 + $0x20] sm:$0xff]
    %v44 = vld [vmem:[#allocation2 + $0x28] sm:$0xff]
    %v45 = vld [vmem:[#allocation2 + $0x30] sm:$0xff]
    %v46 = vld [vmem:[#allocation2 + $0x38] sm:$0xff]
    %v47 = vld [vmem:[#allocation2 + $0x40] sm:$0xff]
    %v48 = vld [vmem:[#allocation2 + $0x48] sm:$0xff]
    %v49 = vld [vmem:[#allocation2 + $0x50] sm:$0xff]
    %v50 = vld [vmem:[#allocation2 + $0x58] sm:$0xff]
    %v51 = vld [vmem:[#allocation2 + $0x60] sm:$0xff]
    %v52 = vld [vmem:[#allocation2 + $0x68] sm:$0xff]
    %v53 = vld [vmem:[#allocation2 + $0x70] sm:$0xff]
    %v54 = vld [vmem:[#allocation2 + $0x78] sm:$0xff]
    %v55 = vld [vmem:[#allocation2 + $0x80] sm:$0xff]
    %v56 = vld [vmem:[#allocation2 + $0x88] sm:$0xff]
    %v57 = vld [vmem:[#allocation2 + $0x90] sm:$0xff]
    %v58 = vld [vmem:[#allocation2 + $0x98] sm:$0xff]
    %v59 = vld [vmem:[#allocation2 + $0xa0] sm:$0xff]
    %v60 = vld [vmem:[#allocation2 + $0xa8] sm:$0xff]
    %v61 = vld [vmem:[#allocation2 + $0xb0] sm:$0xff]
    %v62 = vld [vmem:[#allocation2 + $0xb8] sm:$0xff]
    %v63 = vld [vmem:[#allocation2 + $0xc0] sm:$0xff]
    %v64 = vld [vmem:[#allocation2 + $0xc8] sm:$0xff]
    %v65 = vld [vmem:[#allocation2 + $0xd0] sm:$0xff]
    %v66 = vld [vmem:[#allocation2 + $0xd8] sm:$0xff]
    %v67 = vld [vmem:[#allocation2 + $0xe0] sm:$0xff]
    %v68 = vld [vmem:[#allocation2 + $0xe8] sm:$0xff]
    %v69 = vld [vmem:[#allocation2 + $0xf0] sm:$0xff]
    %v70 = vld [vmem:[#allocation2 + $0xf8] sm:$0xff]
    %v71 = vld [vmem:[#allocation2 + $0x100] sm:$0xff]
    %v72 = vld [vmem:[#allocation2 + $0x108] sm:$0xff]
    %v73 = vld [vmem:[#allocation2 + $0x110] sm:$0xff]
    %v74 = vld [vmem:[#allocation2 + $0x118] sm:$0xff]
    %v75 = vld [vmem:[#allocation2 + $0x120] sm:$0xff]
    %v76 = vld [vmem:[#allocation2 + $0x128] sm:$0xff]
    %v77 = vld [vmem:[#allocation2 + $0x130] sm:$0xff]
    %v78 = vld [vmem:[#allocation2 + $0x138] sm:$0xff]
    %v79 = vld [vmem:[#allocation2 + $0x140] sm:$0xff]
    %v80 = vld [vmem:[#allocation2 + $0x148] sm:$0xff]
    %v81 = vld [vmem:[#allocation2 + $0x150] sm:$0xff]
    %v82 = vld [vmem:[#allocation2 + $0x158] sm:$0xff]
    %v83 = vld [vmem:[#allocation2 + $0x160] sm:$0xff]
    %v84 = vld [vmem:[#allocation2 + $0x168] sm:$0xff]
    %v85 = vld [vmem:[#allocation2 + $0x170] sm:$0xff]
    %v86 = vld [vmem:[#allocation2 + $0x178] sm:$0xff]
    %v87 = vld [vmem:[#allocation2 + $0x180] sm:$0xff]
    %v88 = vld [vmem:[#allocation2 + $0x188] sm:$0xff]
    %v89 = vld [vmem:[#allocation2 + $0x190] sm:$0xff]
    %v90 = vld [vmem:[#allocation2 + $0x198] sm:$0xff]
    %v91 = vld [vmem:[#allocation2 + $0x1a0] sm:$0xff]
    %v92 = vld [vmem:[#allocation2 + $0x1a8] sm:$0xff]
    %v93 = vld [vmem:[#allocation2 + $0x1b0] sm:$0xff]
    %v94 = vld [vmem:[#allocation2 + $0x1b8] sm:$0xff]
    %v95 = vld [vmem:[#allocation2 + $0x1c0] sm:$0xff]
    %v96 = vld [vmem:[#allocation2 + $0x1c8] sm:$0xff]
    %v97 = vld [vmem:[#allocation2 + $0x1d0] sm:$0xff]
    %v98 = vld [vmem:[#allocation2 + $0x1d8] sm:$0xff]
    %v99 = vld [vmem:[#allocation2 + $0x1e0] sm:$0xff]
    %v100 = vld [vmem:[#allocation2 + $0x1e8] sm:$0xff]
    %v101 = vld [vmem:[#allocation2 + $0x1f0] sm:$0xff]
    %v102 = vld [vmem:[#allocation2 + $0x1f8] sm:$0xff]
    %v103 = vld [vmem:[#allocation2 + $0x200] sm:$0xff]
    %v104 = vld [vmem:[#allocation2 + $0x208] sm:$0xff]
    %v105 = vld [vmem:[#allocation2 + $0x210] sm:$0xff]
    %v106 = vld [vmem:[#allocation2 + $0x218] sm:$0xff]
    %v107 = vld [vmem:[#allocation2 + $0x220] sm:$0xff]
    %v108 = vld [vmem:[#allocation2 + $0x228] sm:$0xff]
    %v109 = vld [vmem:[#allocation2 + $0x230] sm:$0xff]
    %v110 = vld [vmem:[#allocation2 + $0x238] sm:$0xff]
    %v111 = vld [vmem:[#allocation2 + $0x240] sm:$0xff]
    %v112 = vld [vmem:[#allocation2 + $0x248] sm:$0xff]
    %v113 = vld [vmem:[#allocation2 + $0x250] sm:$0xff]
    %v114 = vld [vmem:[#allocation2 + $0x258] sm:$0xff]
    %v115 = vld [vmem:[#allocation2 + $0x260] sm:$0xff]
    %v116 = vld [vmem:[#allocation2 + $0x268] sm:$0xff]
    %v117 = vld [vmem:[#allocation2 + $0x270] sm:$0xff]
    %v118 = vld [vmem:[#allocation2 + $0x278] sm:$0xff]
    %v119 = vld [vmem:[#allocation2 + $0x280] sm:$0xff]
    %v120 = vld [vmem:[#allocation2 + $0x288] sm:$0xff]
    %v121 = vld [vmem:[#allocation2 + $0x290] sm:$0xff]
    %v122 = vld [vmem:[#allocation2 + $0x298] sm:$0xff]
    %v123 = vld [vmem:[#allocation2 + $0x2a0] sm:$0xff]
    %v124 = vld [vmem:[#allocation2 + $0x2a8] sm:$0xff]
    %v125 = vld [vmem:[#allocation2 + $0x2b0] sm:$0xff]
    %v126 = vld [vmem:[#allocation2 + $0x2b8] sm:$0xff]
    %v127 = vld [vmem:[#allocation2 + $0x2c0] sm:$0xff]
    %v128 = vld [vmem:[#allocation2 + $0x2c8] sm:$0xff]
    %v129 = vld [vmem:[#allocation2 + $0x2d0] sm:$0xff]
    %v130 = vld [vmem:[#allocation2 + $0x2d8] sm:$0xff]
    %v131 = vld [vmem:[#allocation2 + $0x2e0] sm:$0xff]
    %v132 = vld [vmem:[#allocation2 + $0x2e8] sm:$0xff]
    %v133 = vld [vmem:[#allocation2 + $0x2f0] sm:$0xff]
    %v134 = vld [vmem:[#allocation2 + $0x2f8] sm:$0xff]
    %v135 = vld [vmem:[#allocation2 + $0x300] sm:$0xff]
    %v136 = vld [vmem:[#allocation2 + $0x308] sm:$0xff]
    %v137 = vld [vmem:[#allocation2 + $0x310] sm:$0xff]
    %v138 = vld [vmem:[#allocation2 + $0x318] sm:$0xff]
    %v139 = vld [vmem:[#allocation2 + $0x320] sm:$0xff]
    %v140 = vld [vmem:[#allocation2 + $0x328] sm:$0xff]
    %v141 = vld [vmem:[#allocation2 + $0x330] sm:$0xff]
    %v142 = vld [vmem:[#allocation2 + $0x338] sm:$0xff]
    %v143 = vld [vmem:[#allocation2 + $0x340] sm:$0xff]
    %v144 = vld [vmem:[#allocation2 + $0x348] sm:$0xff]
    %v145 = vld [vmem:[#allocation2 + $0x350] sm:$0xff]
    %v146 = vld [vmem:[#allocation2 + $0x358] sm:$0xff]
    %v147 = vld [vmem:[#allocation2 + $0x360] sm:$0xff]
    %v148 = vld [vmem:[#allocation2 + $0x368] sm:$0xff]
    %v149 = vld [vmem:[#allocation2 + $0x370] sm:$0xff]
    %v150 = vld [vmem:[#allocation2 + $0x378] sm:$0xff]
    %v151 = vld [vmem:[#allocation2 + $0x380] sm:$0xff]
    %v152 = vld [vmem:[#allocation2 + $0x388] sm:$0xff]
    %v153 = vld [vmem:[#allocation2 + $0x390] sm:$0xff]
    %v154 = vld [vmem:[#allocation2 + $0x398] sm:$0xff]
    %v155 = vld [vmem:[#allocation2 + $0x3a0] sm:$0xff]
    %v156 = vld [vmem:[#allocation2 + $0x3a8] sm:$0xff]
    %v157 = vld [vmem:[#allocation2 + $0x3b0] sm:$0xff]
    %v158 = vld [vmem:[#allocation2 + $0x3b8] sm:$0xff]
    %v159 = vld [vmem:[#allocation2 + $0x3c0] sm:$0xff]
    %v160 = vld [vmem:[#allocation2 + $0x3c8] sm:$0xff]
    %v161 = vld [vmem:[#allocation2 + $0x3d0] sm:$0xff]
    %v162 = vld [vmem:[#allocation2 + $0x3d8] sm:$0xff]
    %v163 = vld [vmem:[#allocation2 + $0x3e0] sm:$0xff]
    %v164 = vld [vmem:[#allocation2 + $0x3e8] sm:$0xff]
    %v165 = vld [vmem:[#allocation2 + $0x3f0] sm:$0xff]
    %v166 = vld [vmem:[#allocation2 + $0x3f8] sm:$0xff]
    %v167 = vld [vmem:[%s2] sm:$0xff]
    %v169 = vlaneseq
    %v170 = vshrl.u32 %v169, 7
    %v171 = vsub.s32 0, %v170
    %v172 = vrot.slane %v167, %v171
    %v173 = vlaneseq
    %v174 = vshrl.u32 %v173, 7
    %v175 = vsub.s32 1, %v174
    %v176 = vrot.slane %v167, %v175
    %v177 = vlaneseq
    %v178 = vshrl.u32 %v177, 7
    %v179 = vsub.s32 2, %v178
    %v180 = vrot.slane %v167, %v179
    %v181 = vlaneseq
    %v182 = vshrl.u32 %v181, 7
    %v183 = vsub.s32 3, %v182
    %v184 = vrot.slane %v167, %v183
    %v185 = vlaneseq
    %v186 = vshrl.u32 %v185, 7
    %v187 = vsub.s32 4, %v186
    %v188 = vrot.slane %v167, %v187
    %v189 = vlaneseq
    %v190 = vshrl.u32 %v189, 7
    %v191 = vsub.s32 5, %v190
    %v192 = vrot.slane %v167, %v191
    %v193 = vlaneseq
    %v194 = vshrl.u32 %v193, 7
    %v195 = vsub.s32 6, %v194
    %v196 = vrot.slane %v167, %v195
    %v197 = vlaneseq
    %v198 = vshrl.u32 %v197, 7
    %v199 = vsub.s32 7, %v198
    %v200 = vrot.slane %v167, %v199
    %v337 = vunpack.c.l.b16 %v39
    %v338 = vunpack.c.h.b16 %v39
    %v339 = vunpack.c.l.b16 %v40
    %v340 = vunpack.c.h.b16 %v40
    %v341 = vunpack.c.l.b16 %v41
    %v342 = vunpack.c.h.b16 %v41
    %v343 = vunpack.c.l.b16 %v42
    %v344 = vunpack.c.h.b16 %v42
    %v345 = vunpack.c.l.b16 %v43
    %v346 = vunpack.c.h.b16 %v43
    %v347 = vunpack.c.l.b16 %v44
    %v348 = vunpack.c.h.b16 %v44
    %v349 = vunpack.c.l.b16 %v45
    %v350 = vunpack.c.h.b16 %v45
    %v351 = vunpack.c.l.b16 %v46
    %v352 = vunpack.c.h.b16 %v46
    %v353 = vunpack.c.l.b16 %v47
    %v354 = vunpack.c.h.b16 %v47
    %v355 = vunpack.c.l.b16 %v48
    %v356 = vunpack.c.h.b16 %v48
    %v357 = vunpack.c.l.b16 %v49
    %v358 = vunpack.c.h.b16 %v49
    %v359 = vunpack.c.l.b16 %v50
    %v360 = vunpack.c.h.b16 %v50
    %v361 = vunpack.c.l.b16 %v51
    %v362 = vunpack.c.h.b16 %v51
    %v363 = vunpack.c.l.b16 %v52
    %v364 = vunpack.c.h.b16 %v52
    %v365 = vunpack.c.l.b16 %v53
    %v366 = vunpack.c.h.b16 %v53
    %v367 = vunpack.c.l.b16 %v54
    %v368 = vunpack.c.h.b16 %v54
    %v369 = vunpack.c.l.b16 %v55
    %v370 = vunpack.c.h.b16 %v55
    %v371 = vunpack.c.l.b16 %v56
    %v372 = vunpack.c.h.b16 %v56
    %v373 = vunpack.c.l.b16 %v57
    %v374 = vunpack.c.h.b16 %v57
    %v375 = vunpack.c.l.b16 %v58
    %v376 = vunpack.c.h.b16 %v58
    %v377 = vunpack.c.l.b16 %v59
    %v378 = vunpack.c.h.b16 %v59
    %v379 = vunpack.c.l.b16 %v60
    %v380 = vunpack.c.h.b16 %v60
    %v381 = vunpack.c.l.b16 %v61
    %v382 = vunpack.c.h.b16 %v61
    %v383 = vunpack.c.l.b16 %v62
    %v384 = vunpack.c.h.b16 %v62
    %v385 = vunpack.c.l.b16 %v63
    %v386 = vunpack.c.h.b16 %v63
    %v387 = vunpack.c.l.b16 %v64
    %v388 = vunpack.c.h.b16 %v64
    %v389 = vunpack.c.l.b16 %v65
    %v390 = vunpack.c.h.b16 %v65
    %v391 = vunpack.c.l.b16 %v66
    %v392 = vunpack.c.h.b16 %v66
    %v393 = vunpack.c.l.b16 %v67
    %v394 = vunpack.c.h.b16 %v67
    %v395 = vunpack.c.l.b16 %v68
    %v396 = vunpack.c.h.b16 %v68
    %v397 = vunpack.c.l.b16 %v69
    %v398 = vunpack.c.h.b16 %v69
    %v399 = vunpack.c.l.b16 %v70
    %v400 = vunpack.c.h.b16 %v70
    %v401 = vunpack.c.l.b16 %v71
    %v402 = vunpack.c.h.b16 %v71
    %v403 = vunpack.c.l.b16 %v72
    %v404 = vunpack.c.h.b16 %v72
    %v405 = vunpack.c.l.b16 %v73
    %v406 = vunpack.c.h.b16 %v73
    %v407 = vunpack.c.l.b16 %v74
    %v408 = vunpack.c.h.b16 %v74
    %v409 = vunpack.c.l.b16 %v75
    %v410 = vunpack.c.h.b16 %v75
    %v411 = vunpack.c.l.b16 %v76
    %v412 = vunpack.c.h.b16 %v76
    %v413 = vunpack.c.l.b16 %v77
    %v414 = vunpack.c.h.b16 %v77
    %v415 = vunpack.c.l.b16 %v78
    %v416 = vunpack.c.h.b16 %v78
    %v417 = vunpack.c.l.b16 %v79
    %v418 = vunpack.c.h.b16 %v79
    %v419 = vunpack.c.l.b16 %v80
    %v420 = vunpack.c.h.b16 %v80
    %v421 = vunpack.c.l.b16 %v81
    %v422 = vunpack.c.h.b16 %v81
    %v423 = vunpack.c.l.b16 %v82
    %v424 = vunpack.c.h.b16 %v82
    %v425 = vunpack.c.l.b16 %v83
    %v426 = vunpack.c.h.b16 %v83
    %v427 = vunpack.c.l.b16 %v84
    %v428 = vunpack.c.h.b16 %v84
    %v429 = vunpack.c.l.b16 %v85
    %v430 = vunpack.c.h.b16 %v85
    %v431 = vunpack.c.l.b16 %v86
    %v432 = vunpack.c.h.b16 %v86
    %v433 = vunpack.c.l.b16 %v87
    %v434 = vunpack.c.h.b16 %v87
    %v435 = vunpack.c.l.b16 %v88
    %v436 = vunpack.c.h.b16 %v88
    %v437 = vunpack.c.l.b16 %v89
    %v438 = vunpack.c.h.b16 %v89
    %v439 = vunpack.c.l.b16 %v90
    %v440 = vunpack.c.h.b16 %v90
    %v441 = vunpack.c.l.b16 %v91
    %v442 = vunpack.c.h.b16 %v91
    %v443 = vunpack.c.l.b16 %v92
    %v444 = vunpack.c.h.b16 %v92
    %v445 = vunpack.c.l.b16 %v93
    %v446 = vunpack.c.h.b16 %v93
    %v447 = vunpack.c.l.b16 %v94
    %v448 = vunpack.c.h.b16 %v94
    %v449 = vunpack.c.l.b16 %v95
    %v450 = vunpack.c.h.b16 %v95
    %v451 = vunpack.c.l.b16 %v96
    %v452 = vunpack.c.h.b16 %v96
    %v453 = vunpack.c.l.b16 %v97
    %v454 = vunpack.c.h.b16 %v97
    %v455 = vunpack.c.l.b16 %v98
    %v456 = vunpack.c.h.b16 %v98
    %v457 = vunpack.c.l.b16 %v99
    %v458 = vunpack.c.h.b16 %v99
    %v459 = vunpack.c.l.b16 %v100
    %v460 = vunpack.c.h.b16 %v100
    %v461 = vunpack.c.l.b16 %v101
    %v462 = vunpack.c.h.b16 %v101
    %v463 = vunpack.c.l.b16 %v102
    %v464 = vunpack.c.h.b16 %v102
    %v465 = vunpack.c.l.b16 %v103
    %v466 = vunpack.c.h.b16 %v103
    %v467 = vunpack.c.l.b16 %v104
    %v468 = vunpack.c.h.b16 %v104
    %v469 = vunpack.c.l.b16 %v105
    %v470 = vunpack.c.h.b16 %v105
    %v471 = vunpack.c.l.b16 %v106
    %v472 = vunpack.c.h.b16 %v106
    %v473 = vunpack.c.l.b16 %v107
    %v474 = vunpack.c.h.b16 %v107
    %v475 = vunpack.c.l.b16 %v108
    %v476 = vunpack.c.h.b16 %v108
    %v477 = vunpack.c.l.b16 %v109
    %v478 = vunpack.c.h.b16 %v109
    %v479 = vunpack.c.l.b16 %v110
    %v480 = vunpack.c.h.b16 %v110
    %v481 = vunpack.c.l.b16 %v111
    %v482 = vunpack.c.h.b16 %v111
    %v483 = vunpack.c.l.b16 %v112
    %v484 = vunpack.c.h.b16 %v112
    %v485 = vunpack.c.l.b16 %v113
    %v486 = vunpack.c.h.b16 %v113
    %v487 = vunpack.c.l.b16 %v114
    %v488 = vunpack.c.h.b16 %v114
    %v489 = vunpack.c.l.b16 %v115
    %v490 = vunpack.c.h.b16 %v115
    %v491 = vunpack.c.l.b16 %v116
    %v492 = vunpack.c.h.b16 %v116
    %v493 = vunpack.c.l.b16 %v117
    %v494 = vunpack.c.h.b16 %v117
    %v495 = vunpack.c.l.b16 %v118
    %v496 = vunpack.c.h.b16 %v118
    %v497 = vunpack.c.l.b16 %v119
    %v498 = vunpack.c.h.b16 %v119
    %v499 = vunpack.c.l.b16 %v120
    %v500 = vunpack.c.h.b16 %v120
    %v501 = vunpack.c.l.b16 %v121
    %v502 = vunpack.c.h.b16 %v121
    %v503 = vunpack.c.l.b16 %v122
    %v504 = vunpack.c.h.b16 %v122
    %v505 = vunpack.c.l.b16 %v123
    %v506 = vunpack.c.h.b16 %v123
    %v507 = vunpack.c.l.b16 %v124
    %v508 = vunpack.c.h.b16 %v124
    %v509 = vunpack.c.l.b16 %v125
    %v510 = vunpack.c.h.b16 %v125
    %v511 = vunpack.c.l.b16 %v126
    %v512 = vunpack.c.h.b16 %v126
    %v513 = vunpack.c.l.b16 %v127
    %v514 = vunpack.c.h.b16 %v127
    %v515 = vunpack.c.l.b16 %v128
    %v516 = vunpack.c.h.b16 %v128
    %v517 = vunpack.c.l.b16 %v129
    %v518 = vunpack.c.h.b16 %v129
    %v519 = vunpack.c.l.b16 %v130
    %v520 = vunpack.c.h.b16 %v130
    %v521 = vunpack.c.l.b16 %v131
    %v522 = vunpack.c.h.b16 %v131
    %v523 = vunpack.c.l.b16 %v132
    %v524 = vunpack.c.h.b16 %v132
    %v525 = vunpack.c.l.b16 %v133
    %v526 = vunpack.c.h.b16 %v133
    %v527 = vunpack.c.l.b16 %v134
    %v528 = vunpack.c.h.b16 %v134
    %v529 = vunpack.c.l.b16 %v135
    %v530 = vunpack.c.h.b16 %v135
    %v531 = vunpack.c.l.b16 %v136
    %v532 = vunpack.c.h.b16 %v136
    %v533 = vunpack.c.l.b16 %v137
    %v534 = vunpack.c.h.b16 %v137
    %v535 = vunpack.c.l.b16 %v138
    %v536 = vunpack.c.h.b16 %v138
    %v537 = vunpack.c.l.b16 %v139
    %v538 = vunpack.c.h.b16 %v139
    %v539 = vunpack.c.l.b16 %v140
    %v540 = vunpack.c.h.b16 %v140
    %v541 = vunpack.c.l.b16 %v141
    %v542 = vunpack.c.h.b16 %v141
    %v543 = vunpack.c.l.b16 %v142
    %v544 = vunpack.c.h.b16 %v142
    %v545 = vunpack.c.l.b16 %v143
    %v546 = vunpack.c.h.b16 %v143
    %v547 = vunpack.c.l.b16 %v144
    %v548 = vunpack.c.h.b16 %v144
    %v549 = vunpack.c.l.b16 %v145
    %v550 = vunpack.c.h.b16 %v145
    %v551 = vunpack.c.l.b16 %v146
    %v552 = vunpack.c.h.b16 %v146
    %v553 = vunpack.c.l.b16 %v147
    %v554 = vunpack.c.h.b16 %v147
    %v555 = vunpack.c.l.b16 %v148
    %v556 = vunpack.c.h.b16 %v148
    %v557 = vunpack.c.l.b16 %v149
    %v558 = vunpack.c.h.b16 %v149
    %v559 = vunpack.c.l.b16 %v150
    %v560 = vunpack.c.h.b16 %v150
    %v561 = vunpack.c.l.b16 %v151
    %v562 = vunpack.c.h.b16 %v151
    %v563 = vunpack.c.l.b16 %v152
    %v564 = vunpack.c.h.b16 %v152
    %v565 = vunpack.c.l.b16 %v153
    %v566 = vunpack.c.h.b16 %v153
    %v567 = vunpack.c.l.b16 %v154
    %v568 = vunpack.c.h.b16 %v154
    %v569 = vunpack.c.l.b16 %v155
    %v570 = vunpack.c.h.b16 %v155
    %v571 = vunpack.c.l.b16 %v156
    %v572 = vunpack.c.h.b16 %v156
    %v573 = vunpack.c.l.b16 %v157
    %v574 = vunpack.c.h.b16 %v157
    %v575 = vunpack.c.l.b16 %v158
    %v576 = vunpack.c.h.b16 %v158
    %v577 = vunpack.c.l.b16 %v159
    %v578 = vunpack.c.h.b16 %v159
    %v579 = vunpack.c.l.b16 %v160
    %v580 = vunpack.c.h.b16 %v160
    %v581 = vunpack.c.l.b16 %v161
    %v582 = vunpack.c.h.b16 %v161
    %v583 = vunpack.c.l.b16 %v162
    %v584 = vunpack.c.h.b16 %v162
    %v585 = vunpack.c.l.b16 %v163
    %v586 = vunpack.c.h.b16 %v163
    %v587 = vunpack.c.l.b16 %v164
    %v588 = vunpack.c.h.b16 %v164
    %v589 = vunpack.c.l.b16 %v165
    %v590 = vunpack.c.h.b16 %v165
    %v591 = vunpack.c.l.b16 %v166
    %v592 = vunpack.c.h.b16 %v166
    %v593 = vpack.c.b16 %v345, %v337
    %v594 = vpack.c.b16 %v346, %v338
    %v595 = vpack.c.b16 %v347, %v339
    %v596 = vpack.c.b16 %v348, %v340
    %v597 = vpack.c.b16 %v349, %v341
    %v598 = vpack.c.b16 %v350, %v342
    %v599 = vpack.c.b16 %v351, %v343
    %v600 = vpack.c.b16 %v352, %v344
    %v601 = vpack.c.b16 %v361, %v353
    %v602 = vpack.c.b16 %v362, %v354
    %v603 = vpack.c.b16 %v363, %v355
    %v604 = vpack.c.b16 %v364, %v356
    %v605 = vpack.c.b16 %v365, %v357
    %v606 = vpack.c.b16 %v366, %v358
    %v607 = vpack.c.b16 %v367, %v359
    %v608 = vpack.c.b16 %v368, %v360
    %v609 = vpack.c.b16 %v377, %v369
    %v610 = vpack.c.b16 %v378, %v370
    %v611 = vpack.c.b16 %v379, %v371
    %v612 = vpack.c.b16 %v380, %v372
    %v613 = vpack.c.b16 %v381, %v373
    %v614 = vpack.c.b16 %v382, %v374
    %v615 = vpack.c.b16 %v383, %v375
    %v616 = vpack.c.b16 %v384, %v376
    %v617 = vpack.c.b16 %v393, %v385
    %v618 = vpack.c.b16 %v394, %v386
    %v619 = vpack.c.b16 %v395, %v387
    %v620 = vpack.c.b16 %v396, %v388
    %v621 = vpack.c.b16 %v397, %v389
    %v622 = vpack.c.b16 %v398, %v390
    %v623 = vpack.c.b16 %v399, %v391
    %v624 = vpack.c.b16 %v400, %v392
    %v625 = vpack.c.b16 %v409, %v401
    %v626 = vpack.c.b16 %v410, %v402
    %v627 = vpack.c.b16 %v411, %v403
    %v628 = vpack.c.b16 %v412, %v404
    %v629 = vpack.c.b16 %v413, %v405
    %v630 = vpack.c.b16 %v414, %v406
    %v631 = vpack.c.b16 %v415, %v407
    %v632 = vpack.c.b16 %v416, %v408
    %v633 = vpack.c.b16 %v425, %v417
    %v634 = vpack.c.b16 %v426, %v418
    %v635 = vpack.c.b16 %v427, %v419
    %v636 = vpack.c.b16 %v428, %v420
    %v637 = vpack.c.b16 %v429, %v421
    %v638 = vpack.c.b16 %v430, %v422
    %v639 = vpack.c.b16 %v431, %v423
    %v640 = vpack.c.b16 %v432, %v424
    %v641 = vpack.c.b16 %v441, %v433
    %v642 = vpack.c.b16 %v442, %v434
    %v643 = vpack.c.b16 %v443, %v435
    %v644 = vpack.c.b16 %v444, %v436
    %v645 = vpack.c.b16 %v445, %v437
    %v646 = vpack.c.b16 %v446, %v438
    %v647 = vpack.c.b16 %v447, %v439
    %v648 = vpack.c.b16 %v448, %v440
    %v649 = vpack.c.b16 %v457, %v449
    %v650 = vpack.c.b16 %v458, %v450
    %v651 = vpack.c.b16 %v459, %v451
    %v652 = vpack.c.b16 %v460, %v452
    %v653 = vpack.c.b16 %v461, %v453
    %v654 = vpack.c.b16 %v462, %v454
    %v655 = vpack.c.b16 %v463, %v455
    %v656 = vpack.c.b16 %v464, %v456
    %v657 = vpack.c.b16 %v473, %v465
    %v658 = vpack.c.b16 %v474, %v466
    %v659 = vpack.c.b16 %v475, %v467
    %v660 = vpack.c.b16 %v476, %v468
    %v661 = vpack.c.b16 %v477, %v469
    %v662 = vpack.c.b16 %v478, %v470
    %v663 = vpack.c.b16 %v479, %v471
    %v664 = vpack.c.b16 %v480, %v472
    %v665 = vpack.c.b16 %v489, %v481
    %v666 = vpack.c.b16 %v490, %v482
    %v667 = vpack.c.b16 %v491, %v483
    %v668 = vpack.c.b16 %v492, %v484
    %v669 = vpack.c.b16 %v493, %v485
    %v670 = vpack.c.b16 %v494, %v486
    %v671 = vpack.c.b16 %v495, %v487
    %v672 = vpack.c.b16 %v496, %v488
    %v673 = vpack.c.b16 %v505, %v497
    %v674 = vpack.c.b16 %v506, %v498
    %v675 = vpack.c.b16 %v507, %v499
    %v676 = vpack.c.b16 %v508, %v500
    %v677 = vpack.c.b16 %v509, %v501
    %v678 = vpack.c.b16 %v510, %v502
    %v679 = vpack.c.b16 %v511, %v503
    %v680 = vpack.c.b16 %v512, %v504
    %v681 = vpack.c.b16 %v521, %v513
    %v682 = vpack.c.b16 %v522, %v514
    %v683 = vpack.c.b16 %v523, %v515
    %v684 = vpack.c.b16 %v524, %v516
    %v685 = vpack.c.b16 %v525, %v517
    %v686 = vpack.c.b16 %v526, %v518
    %v687 = vpack.c.b16 %v527, %v519
    %v688 = vpack.c.b16 %v528, %v520
    %v689 = vpack.c.b16 %v537, %v529
    %v690 = vpack.c.b16 %v538, %v530
    %v691 = vpack.c.b16 %v539, %v531
    %v692 = vpack.c.b16 %v540, %v532
    %v693 = vpack.c.b16 %v541, %v533
    %v694 = vpack.c.b16 %v542, %v534
    %v695 = vpack.c.b16 %v543, %v535
    %v696 = vpack.c.b16 %v544, %v536
    %v697 = vpack.c.b16 %v553, %v545
    %v698 = vpack.c.b16 %v554, %v546
    %v699 = vpack.c.b16 %v555, %v547
    %v700 = vpack.c.b16 %v556, %v548
    %v701 = vpack.c.b16 %v557, %v549
    %v702 = vpack.c.b16 %v558, %v550
    %v703 = vpack.c.b16 %v559, %v551
    %v704 = vpack.c.b16 %v560, %v552
    %v705 = vpack.c.b16 %v569, %v561
    %v706 = vpack.c.b16 %v570, %v562
    %v707 = vpack.c.b16 %v571, %v563
    %v708 = vpack.c.b16 %v572, %v564
    %v709 = vpack.c.b16 %v573, %v565
    %v710 = vpack.c.b16 %v574, %v566
    %v711 = vpack.c.b16 %v575, %v567
    %v712 = vpack.c.b16 %v576, %v568
    %v713 = vpack.c.b16 %v585, %v577
    %v714 = vpack.c.b16 %v586, %v578
    %v715 = vpack.c.b16 %v587, %v579
    %v716 = vpack.c.b16 %v588, %v580
    %v717 = vpack.c.b16 %v589, %v581
    %v718 = vpack.c.b16 %v590, %v582
    %v719 = vpack.c.b16 %v591, %v583
    %v720 = vpack.c.b16 %v592, %v584
    %849 = vmatprep.subr.bf16.mxu0 %v650
    %850 = vmatpush1.bf16.msra.mxu0 %v649
    %851 = vmatprep.subr.bf16.mxu0 %v642
    %852 = vmatpush1.bf16.msra.mxu0 %v641
    %853 = vmatprep.subr.bf16.mxu0 %v634
    %854 = vmatpush1.bf16.msra.mxu0 %v633
    %855 = vmatprep.subr.bf16.mxu0 %v626
    %856 = vmatpush1.bf16.msra.mxu0 %v625
    %857 = vmatprep.subr.bf16.mxu0 %v618
    %858 = vmatpush1.bf16.msra.mxu0 %v617
    %859 = vmatprep.subr.bf16.mxu0 %v610
    %860 = vmatpush1.bf16.msra.mxu0 %v609
    %861 = vmatprep.subr.bf16.mxu0 %v602
    %862 = vmatpush1.bf16.msra.mxu0 %v601
    %863 = vmatprep.subr.bf16.mxu0 %v594
    %864 = vmatpush1.bf16.msra.mxu0 %v593
    %865 = vmatprep.subr.bf16.mxu0 %v714
    %866 = vmatpush2.bf16.msra.mxu0 %v713
    %867 = vmatprep.subr.bf16.mxu0 %v706
    %868 = vmatpush2.bf16.msra.mxu0 %v705
    %869 = vmatprep.subr.bf16.mxu0 %v698
    %870 = vmatpush2.bf16.msra.mxu0 %v697
    %871 = vmatprep.subr.bf16.mxu0 %v690
    %872 = vmatpush2.bf16.msra.mxu0 %v689
    %873 = vmatprep.subr.bf16.mxu0 %v682
    %874 = vmatpush2.bf16.msra.mxu0 %v681
    %875 = vmatprep.subr.bf16.mxu0 %v674
    %876 = vmatpush2.bf16.msra.mxu0 %v673
    %877 = vmatprep.subr.bf16.mxu0 %v666
    %878 = vmatpush2.bf16.msra.mxu0 %v665
    %879 = vmatprep.subr.bf16.mxu0 %v658
    %880 = vmatpush2.bf16.msra.mxu0 %v657
    %881 = vmatprep.mubr.bf16.mxu0 %v36
    %882 = vmatmul.mubr.bf16.gmra.mxu0 %v35
    %v883 = vpop.f32.mrf.mxu0
    %v884 = vadd.f32 %v172, %v883
    %v885 = vpop.f32.mrf.mxu0
    %v886 = vadd.f32 %v176, %v885
    %v887 = vpop.f32.mrf.mxu0
    %v888 = vadd.f32 %v172, %v887
    %v889 = vpop.f32.mrf.mxu0
    %v890 = vadd.f32 %v176, %v889
    %891 = vmatprep.mubr.bf16.mxu0 %v38
    %892 = vmatmul.mubr.bf16.gmra.mxu0 %v37
    %v893 = vpop.f32.mrf.mxu0
    %v894 = vadd.f32 %v172, %v893
    %v895 = vpop.f32.mrf.mxu0
    %v896 = vadd.f32 %v176, %v895
    %v897 = vpop.f32.mrf.mxu0
    %v898 = vpop.f32.mrf.mxu0
    %899 = vdwg.mxu0
    %900 = vmatprep.subr.bf16.mxu0 %v652
    %901 = vmatpush1.bf16.msra.mxu0 %v651
    %902 = vmatprep.subr.bf16.mxu0 %v644
    %903 = vmatpush1.bf16.msra.mxu0 %v643
    %904 = vmatprep.subr.bf16.mxu0 %v636
    %905 = vmatpush1.bf16.msra.mxu0 %v635
    %906 = vmatprep.subr.bf16.mxu0 %v628
    %907 = vmatpush1.bf16.msra.mxu0 %v627
    %908 = vmatprep.subr.bf16.mxu0 %v620
    %909 = vmatpush1.bf16.msra.mxu0 %v619
    %910 = vmatprep.subr.bf16.mxu0 %v612
    %911 = vmatpush1.bf16.msra.mxu0 %v611
    %912 = vmatprep.subr.bf16.mxu0 %v604
    %913 = vmatpush1.bf16.msra.mxu0 %v603
    %914 = vmatprep.subr.bf16.mxu0 %v596
    %915 = vmatpush1.bf16.msra.mxu0 %v595
    %916 = vmatprep.subr.bf16.mxu0 %v716
    %917 = vmatpush2.bf16.msra.mxu0 %v715
    %918 = vmatprep.subr.bf16.mxu0 %v708
    %919 = vmatpush2.bf16.msra.mxu0 %v707
    %920 = vmatprep.subr.bf16.mxu0 %v700
    %921 = vmatpush2.bf16.msra.mxu0 %v699
    %922 = vmatprep.subr.bf16.mxu0 %v692
    %923 = vmatpush2.bf16.msra.mxu0 %v691
    %924 = vmatprep.subr.bf16.mxu0 %v684
    %925 = vmatpush2.bf16.msra.mxu0 %v683
    %926 = vmatprep.subr.bf16.mxu0 %v676
    %927 = vmatpush2.bf16.msra.mxu0 %v675
    %928 = vmatprep.subr.bf16.mxu0 %v668
    %929 = vmatpush2.bf16.msra.mxu0 %v667
    %930 = vmatprep.subr.bf16.mxu0 %v660
    %931 = vmatpush2.bf16.msra.mxu0 %v659
    %932 = vmatprep.mubr.bf16.mxu0 %v36
    %933 = vmatmul.mubr.bf16.gmra.mxu0 %v35
    %v934 = vpop.f32.mrf.mxu0
    %v935 = vadd.f32 %v180, %v934
    %v936 = vpop.f32.mrf.mxu0
    %v937 = vadd.f32 %v184, %v936
    %v938 = vpop.f32.mrf.mxu0
    %v939 = vadd.f32 %v180, %v938
    %v940 = vpop.f32.mrf.mxu0
    %v941 = vadd.f32 %v184, %v940
    %942 = vmatprep.mubr.bf16.mxu0 %v38
    %943 = vmatmul.mubr.bf16.gmra.mxu0 %v37
    %v944 = vpop.f32.mrf.mxu0
    %v945 = vadd.f32 %v180, %v944
    %v946 = vpop.f32.mrf.mxu0
    %v947 = vadd.f32 %v184, %v946
    %v948 = vpop.f32.mrf.mxu0
    %v949 = vpop.f32.mrf.mxu0
    %950 = vdwg.mxu0
    %951 = vmatprep.subr.bf16.mxu0 %v654
    %952 = vmatpush1.bf16.msra.mxu0 %v653
    %953 = vmatprep.subr.bf16.mxu0 %v646
    %954 = vmatpush1.bf16.msra.mxu0 %v645
    %955 = vmatprep.subr.bf16.mxu0 %v638
    %956 = vmatpush1.bf16.msra.mxu0 %v637
    %957 = vmatprep.subr.bf16.mxu0 %v630
    %958 = vmatpush1.bf16.msra.mxu0 %v629
    %959 = vmatprep.subr.bf16.mxu0 %v622
    %960 = vmatpush1.bf16.msra.mxu0 %v621
    %961 = vmatprep.subr.bf16.mxu0 %v614
    %962 = vmatpush1.bf16.msra.mxu0 %v613
    %963 = vmatprep.subr.bf16.mxu0 %v606
    %964 = vmatpush1.bf16.msra.mxu0 %v605
    %965 = vmatprep.subr.bf16.mxu0 %v598
    %966 = vmatpush1.bf16.msra.mxu0 %v597
    %967 = vmatprep.subr.bf16.mxu0 %v718
    %968 = vmatpush2.bf16.msra.mxu0 %v717
    %969 = vmatprep.subr.bf16.mxu0 %v710
    %970 = vmatpush2.bf16.msra.mxu0 %v709
    %971 = vmatprep.subr.bf16.mxu0 %v702
    %972 = vmatpush2.bf16.msra.mxu0 %v701
    %973 = vmatprep.subr.bf16.mxu0 %v694
    %974 = vmatpush2.bf16.msra.mxu0 %v693
    %975 = vmatprep.subr.bf16.mxu0 %v686
    %976 = vmatpush2.bf16.msra.mxu0 %v685
    %977 = vmatprep.subr.bf16.mxu0 %v678
    %978 = vmatpush2.bf16.msra.mxu0 %v677
    %979 = vmatprep.subr.bf16.mxu0 %v670
    %980 = vmatpush2.bf16.msra.mxu0 %v669
    %981 = vmatprep.subr.bf16.mxu0 %v662
    %982 = vmatpush2.bf16.msra.mxu0 %v661
    %983 = vmatprep.mubr.bf16.mxu0 %v36
    %984 = vmatmul.mubr.bf16.gmra.mxu0 %v35
    %v985 = vpop.f32.mrf.mxu0
    %v986 = vadd.f32 %v188, %v985
    %v987 = vpop.f32.mrf.mxu0
    %v988 = vadd.f32 %v192, %v987
    %v989 = vpop.f32.mrf.mxu0
    %v990 = vadd.f32 %v188, %v989
    %v991 = vpop.f32.mrf.mxu0
    %v992 = vadd.f32 %v192, %v991
    %993 = vmatprep.mubr.bf16.mxu0 %v38
    %994 = vmatmul.mubr.bf16.gmra.mxu0 %v37
    %v995 = vpop.f32.mrf.mxu0
    %v996 = vadd.f32 %v188, %v995
    %v997 = vpop.f32.mrf.mxu0
    %v998 = vadd.f32 %v192, %v997
    %v999 = vpop.f32.mrf.mxu0
    %v1000 = vpop.f32.mrf.mxu0
    %1001 = vdwg.mxu0
    %1002 = vmatprep.subr.bf16.mxu0 %v656
    %1003 = vmatpush1.bf16.msra.mxu0 %v655
    %1004 = vmatprep.subr.bf16.mxu0 %v648
    %1005 = vmatpush1.bf16.msra.mxu0 %v647
    %1006 = vmatprep.subr.bf16.mxu0 %v640
    %1007 = vmatpush1.bf16.msra.mxu0 %v639
    %1008 = vmatprep.subr.bf16.mxu0 %v632
    %1009 = vmatpush1.bf16.msra.mxu0 %v631
    %1010 = vmatprep.subr.bf16.mxu0 %v624
    %1011 = vmatpush1.bf16.msra.mxu0 %v623
    %1012 = vmatprep.subr.bf16.mxu0 %v616
    %1013 = vmatpush1.bf16.msra.mxu0 %v615
    %1014 = vmatprep.subr.bf16.mxu0 %v608
    %1015 = vmatpush1.bf16.msra.mxu0 %v607
    %1016 = vmatprep.subr.bf16.mxu0 %v600
    %1017 = vmatpush1.bf16.msra.mxu0 %v599
    %1018 = vmatprep.subr.bf16.mxu0 %v720
    %1019 = vmatpush2.bf16.msra.mxu0 %v719
    %1020 = vmatprep.subr.bf16.mxu0 %v712
    %1021 = vmatpush2.bf16.msra.mxu0 %v711
    %1022 = vmatprep.subr.bf16.mxu0 %v704
    %1023 = vmatpush2.bf16.msra.mxu0 %v703
    %1024 = vmatprep.subr.bf16.mxu0 %v696
    %1025 = vmatpush2.bf16.msra.mxu0 %v695
    %1026 = vmatprep.subr.bf16.mxu0 %v688
    %1027 = vmatpush2.bf16.msra.mxu0 %v687
    %1028 = vmatprep.subr.bf16.mxu0 %v680
    %1029 = vmatpush2.bf16.msra.mxu0 %v679
    %1030 = vmatprep.subr.bf16.mxu0 %v672
    %1031 = vmatpush2.bf16.msra.mxu0 %v671
    %1032 = vmatprep.subr.bf16.mxu0 %v664
    %1033 = vmatpush2.bf16.msra.mxu0 %v663
    %1034 = vmatprep.mubr.bf16.mxu0 %v36
    %1035 = vmatmul.mubr.bf16.gmra.mxu0 %v35
    %v1036 = vpop.f32.mrf.mxu0
    %v1037 = vadd.f32 %v196, %v1036
    %v1038 = vpop.f32.mrf.mxu0
    %v1039 = vadd.f32 %v200, %v1038
    %v1040 = vpop.f32.mrf.mxu0
    %v1041 = vadd.f32 %v196, %v1040
    %v1042 = vpop.f32.mrf.mxu0
    %v1043 = vadd.f32 %v200, %v1042
    %1044 = vmatprep.mubr.bf16.mxu0 %v38
    %1045 = vmatmul.mubr.bf16.gmra.mxu0 %v37
    %v1046 = vpop.f32.mrf.mxu0
    %v1047 = vadd.f32 %v196, %v1046
    %v1048 = vpop.f32.mrf.mxu0
    %v1049 = vadd.f32 %v200, %v1048
    %v1050 = vpop.f32.mrf.mxu0
    %v1051 = vpop.f32.mrf.mxu0
    %1052 = vdwg.mxu0
    %1053 = vst [vmem:[#allocation5] sm:$0xff] %v884
    %1054 = vst [vmem:[#allocation5 + $0x8] sm:$0xff] %v886
    %1055 = vst [vmem:[#allocation5 + $0x10] sm:$0xff] %v935
    %1056 = vst [vmem:[#allocation5 + $0x18] sm:$0xff] %v937
    %1057 = vst [vmem:[#allocation5 + $0x20] sm:$0xff] %v986
    %1058 = vst [vmem:[#allocation5 + $0x28] sm:$0xff] %v988
    %1059 = vst [vmem:[#allocation5 + $0x30] sm:$0xff] %v1037
    %1060 = vst [vmem:[#allocation5 + $0x38] sm:$0xff] %v1039
    %1061 = vst [vmem:[#allocation5 + $0x40] sm:$0xff] %v888
    %1062 = vst [vmem:[#allocation5 + $0x48] sm:$0xff] %v890
    %1063 = vst [vmem:[#allocation5 + $0x50] sm:$0xff] %v939
    %1064 = vst [vmem:[#allocation5 + $0x58] sm:$0xff] %v941
    %1065 = vst [vmem:[#allocation5 + $0x60] sm:$0xff] %v990
    %1066 = vst [vmem:[#allocation5 + $0x68] sm:$0xff] %v992
    %1067 = vst [vmem:[#allocation5 + $0x70] sm:$0xff] %v1041
    %1068 = vst [vmem:[#allocation5 + $0x78] sm:$0xff] %v1043
    %1069 = vst [vmem:[#allocation5 + $0x80] sm:$0xff] %v894
    %1070 = vst [vmem:[#allocation5 + $0x88] sm:$0xff] %v896
    %1071 = vst [vmem:[#allocation5 + $0x90] sm:$0xff] %v945
    %1072 = vst [vmem:[#allocation5 + $0x98] sm:$0xff] %v947
    %1073 = vst [vmem:[#allocation5 + $0xa0] sm:$0xff] %v996
    %1074 = vst [vmem:[#allocation5 + $0xa8] sm:$0xff] %v998
    %1075 = vst [vmem:[#allocation5 + $0xb0] sm:$0xff] %v1047
    %1076 = vst [vmem:[#allocation5 + $0xb8] sm:$0xff] %v1049
    // Predicated region
    $region18: #{dot_product_classifier.1} parent=1 // pred_check
      _
    $region19: #{dot_product_classifier.1} parent=1 // pred_check_branch
      %1078 = sbr.rel (0) target = $region21
    $region20: #{dot_product_classifier.1} parent=1 // pred_region
      %s1080 = ssub.s32 3072, 3072
      %1081 = vsyncadd [#allocation4], %s1080
      %s1082 = sshll.u32 [#allocation5], 4
      %s1083 = int_to_ptr.vmem [resolvable:$true] %s1082
      %1088 = dma.vmem_to_hbm [thread:$0]  %s1083, 3072, %s3, [#allocation4], 1024, 1024, 64
    $region21: #{dot_product_classifier.1} parent=1 // pred_fallthru
      _
    // Predicated region
    $region22: #{dot_product_classifier.1} parent=1 // pred_check
      _
    $region23: #{dot_product_classifier.1} parent=1 // pred_check_branch
      %1090 = sbr.rel (0) target = $region25
    $region24: #{dot_product_classifier.1} parent=1 // pred_region
      %1091 = dma.done [#allocation4], 3072
    $region25: #{dot_product_classifier.1} parent=1 // pred_fallthru
      _
    %1092 = vsyncpa [#allocation3], 1
    %1093 = vsyncpa [#allocation4], 1

</llo_original>
